<compile_context>
chip_gen: v7x
topology: tpu7x:2x2x1
jax: 0.10.0
libtpu: 0.0.40
codegen_flags: <defaults>
</compile_context>

<pallas_src>
import functools

import jax
import jax.numpy as jnp
from jax import lax
from jax.experimental import pallas as pl
from jax.experimental.pallas import tpu as pltpu


def _random_cos_kernel(w_ref, p_ref, b_ref, o_ref):
    """(Cp, K) @ (K, bm) -> + bias column -> cos -> lane-dense (Cp, bm) store."""
    acc = jnp.dot(w_ref[...], p_ref[...], preferred_element_type=jnp.float32)
    o_ref[...] = jnp.cos(acc + b_ref[...]).astype(o_ref.dtype)


def _round_up(x, m):
    return ((x + m - 1) // m) * m


def _num_tensorcores():
    """Best-effort trace-time TensorCores-per-chip count (falls back to 1)."""
    try:
        info = pltpu.get_tpu_info()
        for attr in ("num_cores", "core_count", "num_tensorcores"):
            v = getattr(info, attr, None)
            if isinstance(v, int) and v > 0:
                return v
    except Exception:
        pass
    try:
        kind = getattr(jax.devices()[0], "device_kind", "").lower()
        if any(tag in kind for tag in ("v4", "v5p", "7x")):
            return 2
    except Exception:
        pass
    return 1


@functools.partial(jax.jit, static_argnames=("stride", "padding"))
def random_cos(x_nchw, weight_oihw, bias, *, stride=1, padding=0):
    """cos(conv2d(x, weight, bias)) with PyTorch NCHW/OIHW semantics."""
    assert stride == 1 and padding == 0, (
        "RandomCos Pallas kernel implements the module defaults only "
        "(stride=1, padding=0, dilation=1, groups=1).")
    N, Cin, H, W = x_nchw.shape
    Cout, Cin_w, Kh, Kw = weight_oihw.shape
    assert Cin == Cin_w, "grouped conv not supported"
    Ho, Wo = H - Kh + 1, W - Kw + 1
    M = N * Ho * Wo
    K = Kh * Kw * Cin

    # ---- wrapper-side glue (XLA): im2col straight from NCHW + padding ----
    # patches_t[k, m]: k = (kh, kw, cin), m = (n, ho, wo) -> M on the lane axis.
    # TODO(synk): for large H/W/N build the (K, bm) patch slab in-kernel from a
    # single NHWC input DMA to kill the Kh*Kw x HBM read amplification of im2col.
    taps = jnp.stack(
        [x_nchw[:, :, kh:kh + Ho, kw:kw + Wo]
         for kh in range(Kh) for kw in range(Kw)],
        axis=0)                                                   # (Kh*Kw, N, Cin, Ho, Wo)
    patches_t = jnp.transpose(taps, (0, 2, 1, 3, 4)).reshape(K, M)

    # OIHW -> (cout, kh, kw, cin) -> (Cout, K); column ordering matches patches_t rows.
    w_t = jnp.transpose(weight_oihw, (0, 2, 3, 1)).reshape(Cout, K)

    # Cout only needs sublane (8) alignment now, not a 128-lane pad.
    Cp = _round_up(Cout, 8)
    w_t = jnp.pad(w_t, ((0, Cp - Cout), (0, 0)))
    b_col = jnp.pad(bias.reshape(Cout, 1), ((0, Cp - Cout), (0, 0)))

    # M blocking: big enough to amortize per-step overhead, lane-dense (mult. of
    # 256), and an equal multiple of the TC count on dual-core chips (v7x).
    target_block = 2048
    n_cores = _num_tensorcores()
    grid_m = max(1, pl.cdiv(M, target_block))
    if n_cores > 1:
        grid_m = _round_up(grid_m, n_cores)
    bm = _round_up(pl.cdiv(M, grid_m), 256)
    Mp = grid_m * bm
    patches_t = jnp.pad(patches_t, ((0, 0), (0, Mp - M)))

    out_pad = pl.pallas_call(
        _random_cos_kernel,
        out_shape=jax.ShapeDtypeStruct((Cp, Mp), x_nchw.dtype),
        grid_spec=pltpu.PrefetchScalarGridSpec(
            num_scalar_prefetch=0,
            grid=(grid_m,),
            in_specs=[
                pl.BlockSpec((Cp, K), lambda i: (0, 0)),   # weights (resident)
                pl.BlockSpec((K, bm), lambda i: (0, i)),   # patches block
                pl.BlockSpec((Cp, 1), lambda i: (0, 0)),   # bias    (resident)
            ],
            out_specs=pl.BlockSpec((Cp, bm), lambda i: (0, i)),
        ),
        compiler_params=pltpu.CompilerParams(
            dimension_semantics=("parallel",)),
    )(w_t, patches_t, b_col)

    # Cheap row/lane slice of the (Cout, M) result, then restore PyTorch NCHW.
    out = out_pad[:Cout, :M].reshape(Cout, N, Ho, Wo)
    return jnp.transpose(out, (1, 0, 2, 3))


def _reference(x_nchw, weight_oihw, bias):
    conv = lax.conv_general_dilated(
        x_nchw, weight_oihw,
        window_strides=(1, 1), padding="VALID",
        dimension_numbers=("NCHW", "OIHW", "NCHW"))
    return jnp.cos(conv + bias.reshape(1, -1, 1, 1))


if __name__ == "__main__":
    # Small shapes consistent with the module: nn.Conv2d(4, 8, 3), NCHW input.
    N, Cin, H, W = 2, 4, 16, 16
    Cout, Kh, Kw = 8, 3, 3

    key = jax.random.PRNGKey(0)
    kx, kw_, kb = jax.random.split(key, 3)

    x = jax.random.normal(kx, (N, Cin, H, W), dtype=jnp.float32)
    # Deterministic synthetic Conv2d params (kaiming-uniform-like range).
    fan_in = Cin * Kh * Kw
    bound = 1.0 / (fan_in ** 0.5)
    weight = jax.random.uniform(kw_, (Cout, Cin, Kh, Kw), jnp.float32, -bound, bound)
    bias = jax.random.uniform(kb, (Cout,), jnp.float32, -bound, bound)

    out = random_cos(x, weight, bias)
    out = jax.block_until_ready(out)

    ref = _reference(x, weight, bias)
    assert out.shape == (N, Cout, H - Kh + 1, W - Kw + 1)
    assert jnp.allclose(out, ref, atol=1e-5, rtol=1e-5)

    print("KERNEL_OK")
</pallas_src>

<mosaic_0001>
module attributes {stable_mosaic.version = 11 : i64} {
  func.func @_random_cos_kernel(%arg0: i32, %arg1: memref<8x36xf32, #tpu.memory_space<vmem>>, %arg2: memref<36x512xf32, #tpu.memory_space<vmem>>, %arg3: memref<8x1xf32, #tpu.memory_space<vmem>>, %arg4: memref<8x512xf32, #tpu.memory_space<vmem>>) attributes {dimension_semantics = [#tpu.dimension_semantics<parallel>], iteration_bounds = array<i64: 1>, scalar_prefetch = 0 : i64, scratch_operands = 0 : i64, tpu.core_type = #tpu.core_type<tc>, window_params = [{pipeline_mode = #tpu.pipeline_mode<synchronous>, transform_indices = @transform_0, window_bounds = array<i64: 8, 36>}, {transform_indices = @transform_1, window_bounds = array<i64: 36, 512>}, {pipeline_mode = #tpu.pipeline_mode<synchronous>, transform_indices = @transform_2, window_bounds = array<i64: 8, 1>}, {transform_indices = @transform_3, window_bounds = array<i64: 8, 512>}]} {
    %c0 = arith.constant 0 : index
    %c0_0 = arith.constant 0 : index
    %0 = vector.load %arg1[%c0, %c0_0] : memref<8x36xf32, #tpu.memory_space<vmem>>, vector<8x36xf32>
    %c0_1 = arith.constant 0 : index
    %c0_2 = arith.constant 0 : index
    %1 = vector.load %arg2[%c0_1, %c0_2] : memref<36x512xf32, #tpu.memory_space<vmem>>, vector<36x512xf32>
    %cst = arith.constant dense<0.000000e+00> : vector<8x512xf32>
    %2 = tpu.matmul %0, %1, %cst {dimension_numbers = #tpu.dot_dimension_numbers<[1], [0], [0], [1], [0, 0, 1, 1], [], []>} : vector<8x36xf32>, vector<36x512xf32>, vector<8x512xf32> -> vector<8x512xf32>
    %c0_3 = arith.constant 0 : index
    %c0_4 = arith.constant 0 : index
    %3 = vector.load %arg3[%c0_3, %c0_4] : memref<8x1xf32, #tpu.memory_space<vmem>>, vector<8x1xf32>
    %4 = vector.broadcast %3 : vector<8x1xf32> to vector<8x512xf32>
    %5 = arith.addf %2, %4 : vector<8x512xf32>
    %6 = math.cos %5 : vector<8x512xf32>
    %c0_5 = arith.constant 0 : index
    %c0_6 = arith.constant 0 : index
    %7 = vector.load %arg4[%c0_5, %c0_6] : memref<8x512xf32, #tpu.memory_space<vmem>>, vector<8x512xf32>
    tpu.vector_store %arg4[%c0_5, %c0_6], %6 {strides = array<i32>} : memref<8x512xf32, #tpu.memory_space<vmem>>, vector<8x512xf32>,
    return
  }
  func.func @transform_0(%arg0: i32) -> (i32, i32) {
    %c0_i32 = arith.constant 0 : i32
    %c0_i32_0 = arith.constant 0 : i32
    %c0_i32_1 = arith.constant 0 : i32
    return %c0_i32, %c0_i32_0 : i32, i32
  }
  func.func @transform_1(%arg0: i32) -> (i32, i32) {
    %c0_i32 = arith.constant 0 : i32
    %c0_i32_0 = arith.constant 0 : i32
    return %c0_i32, %arg0 : i32, i32
  }
  func.func @transform_2(%arg0: i32) -> (i32, i32) {
    %c0_i32 = arith.constant 0 : i32
    %c0_i32_0 = arith.constant 0 : i32
    %c0_i32_1 = arith.constant 0 : i32
    return %c0_i32, %c0_i32_0 : i32, i32
  }
  func.func @transform_3(%arg0: i32) -> (i32, i32) {
    %c0_i32 = arith.constant 0 : i32
    %c0_i32_0 = arith.constant 0 : i32
    return %c0_i32, %arg0 : i32, i32
  }
}

</mosaic_0001>

<llo_original>
// kernel: random_cos.1
$region0: #{random_cos.1}
  #allocation0 [shape = 'u32[]', space=smem, size = 0x4, offset = 0x4, fixed_abs, tag = 'smem constant byte address 0x4 - core index']
  #allocation1 [shape = 'u32[144,128]{1,0:T(1,128)}', space=vmem, size = 0x12000, scoped, tag = 'internal scratch']
  %s0 = inlined_call_operand.vmem [shape: f32[8,36], index: 0, kind: input, shape index: {}]
  %s1 = inlined_call_operand.vmem [shape: f32[36,512], index: 1, kind: input, shape index: {}]
  %s2 = inlined_call_operand.vmem [shape: f32[8,1], index: 2, kind: input, shape index: {}]
  %s3 = inlined_call_operand.vmem [shape: f32[8,512], index: 3, kind: output, shape index: {}]
  %s4 = sld [smem:[#allocation0]]
  $region22: #{random_cos.1} parent=0
    _
  %s6 = ssub.s32 1, %s4
  %s7 = scalar_select 0, %s6, %s4
  // Predicated region
  $region2: #{random_cos.1} parent=0 // pred_check
    _
  $region3: #{random_cos.1} parent=0 // pred_check_branch
    %9 = sbr.rel (0) target = $region5
  $region4: #{random_cos.1} parent=0 // pred_region
    _
  $region5: #{random_cos.1} parent=0 // pred_fallthru
    _
  // Predicated region
  $region6: #{random_cos.1} parent=0 // pred_check
    _
  $region7: #{random_cos.1} parent=0 // pred_check_branch
    %11 = sbr.rel (0) target = $region9
  $region8: #{random_cos.1} parent=0 // pred_region
    _
  $region9: #{random_cos.1} parent=0 // pred_fallthru
    _
  // Predicated region
  $region10: #{random_cos.1} parent=0 // pred_check
    _
  $region11: #{random_cos.1} parent=0 // pred_check_branch
    %13 = sbr.rel (0) target = $region13
  $region12: #{random_cos.1} parent=0 // pred_region
    _
  $region13: #{random_cos.1} parent=0 // pred_fallthru
    _
  %v14 = vld [vmem:[%s0] sm:$0xff]
  %v15 = vld [vmem:[%s1] sm:$0xff]
  %v16 = vld [vmem:[%s1 + $0x8] sm:$0xff]
  %v17 = vld [vmem:[%s1 + $0x10] sm:$0xff]
  %v18 = vld [vmem:[%s1 + $0x18] sm:$0xff]
  %v19 = vld [vmem:[%s1 + $0x20] sm:$0xff]
  %v20 = vld [vmem:[%s1 + $0x28] sm:$0xff]
  %v21 = vld [vmem:[%s1 + $0x30] sm:$0xff]
  %v22 = vld [vmem:[%s1 + $0x38] sm:$0xff]
  %v23 = vld [vmem:[%s1 + $0x40] sm:$0xff]
  %v24 = vld [vmem:[%s1 + $0x48] sm:$0xff]
  %v25 = vld [vmem:[%s1 + $0x50] sm:$0xff]
  %v26 = vld [vmem:[%s1 + $0x58] sm:$0xff]
  %v27 = vld [vmem:[%s1 + $0x60] sm:$0xff]
  %v28 = vld [vmem:[%s1 + $0x68] sm:$0xff]
  %v29 = vld [vmem:[%s1 + $0x70] sm:$0xff]
  %v30 = vld [vmem:[%s1 + $0x78] sm:$0xff]
  %v31 = vld [vmem:[%s1 + $0x80] sm:$0xf]
  %v32 = vld [vmem:[%s1 + $0x88] sm:$0xf]
  %v33 = vld [vmem:[%s1 + $0x90] sm:$0xf]
  %v34 = vld [vmem:[%s1 + $0x98] sm:$0xf]
  %v35 = vld [vmem:[%s2] sm:$0xff]
  %37 = vset.pattern.permute.xlu0 0
  %38 = vperm.xlu0 %37, %v35
  %v39 = vpop.permute.xlu0 %38
  %vm41 = vcmask 293888
  %v43 = vsel %vm41, %v14, 0
  %vm45 = vcmask 1043456
  %v47 = vsel %vm45, %v31, 0
  %v50 = vsel %vm45, %v32, 0
  %v53 = vsel %vm45, %v33, 0
  %v56 = vsel %vm45, %v34, 0
  %58 = vmatprep.subr.mxu0 %v16
  %59 = vmatpush1.msra.mxu0 %v15
  %60 = vmatprep.subr.mxu0 %v20
  %61 = vmatpush1.msra.mxu0 %v19
  %62 = vmatprep.subr.mxu0 %v24
  %63 = vmatpush1.msra.mxu0 %v23
  %64 = vmatprep.subr.mxu0 %v28
  %65 = vmatpush1.msra.mxu0 %v27
  %66 = vmatprep.subr.mxu0 %v50
  %67 = vmatpush1.msra.mxu0 %v47
  %68 = vmatprep.subr.mxu0 0.0
  %69 = vmatpush1.msra.mxu0 0.0
  %70 = vmatprep.subr.mxu0 0.0
  %71 = vmatpush1.msra.mxu0 0.0
  %72 = vmatprep.subr.mxu0 0.0
  %73 = vmatpush1.msra.mxu0 0.0
  %74 = vmatprep.subr.mxu0 0.0
  %75 = vmatpush1.msra.mxu0 0.0
  %76 = vmatprep.subr.mxu0 0.0
  %77 = vmatpush1.msra.mxu0 0.0
  %78 = vmatprep.subr.mxu0 0.0
  %79 = vmatpush1.msra.mxu0 0.0
  %80 = vmatprep.subr.mxu0 0.0
  %81 = vmatpush1.msra.mxu0 0.0
  %82 = vmatprep.subr.mxu0 0.0
  %83 = vmatpush1.msra.mxu0 0.0
  %84 = vmatprep.subr.mxu0 0.0
  %85 = vmatpush1.msra.mxu0 0.0
  %86 = vmatprep.subr.mxu0 0.0
  %87 = vmatpush1.msra.mxu0 0.0
  %88 = vmatprep.subr.mxu0 0.0
  %89 = vmatpush1.msra.mxu0 0.0
  %90 = vmatprep.subr.mxu0 0.0
  %91 = vmatpush1.msra.mxu0 0.0
  %92 = vmatprep.subr.mxu0 0.0
  %93 = vmatpush1.msra.mxu0 0.0
  %94 = vmatprep.subr.mxu0 0.0
  %95 = vmatpush1.msra.mxu0 0.0
  %96 = vmatprep.subr.mxu0 0.0
  %97 = vmatpush1.msra.mxu0 0.0
  %98 = vmatprep.subr.mxu0 0.0
  %99 = vmatpush1.msra.mxu0 0.0
  %100 = vmatprep.subr.mxu0 0.0
  %101 = vmatpush1.msra.mxu0 0.0
  %102 = vmatprep.subr.mxu0 0.0
  %103 = vmatpush1.msra.mxu0 0.0
  %104 = vmatprep.subr.mxu0 0.0
  %105 = vmatpush1.msra.mxu0 0.0
  %106 = vmatprep.subr.mxu0 0.0
  %107 = vmatpush1.msra.mxu0 0.0
  %108 = vmatprep.subr.mxu0 0.0
  %109 = vmatpush1.msra.mxu0 0.0
  %110 = vmatprep.subr.mxu0 0.0
  %111 = vmatpush1.msra.mxu0 0.0
  %112 = vmatprep.subr.mxu0 0.0
  %113 = vmatpush1.msra.mxu0 0.0
  %114 = vmatprep.subr.mxu0 0.0
  %115 = vmatpush1.msra.mxu0 0.0
  %116 = vmatprep.subr.mxu0 0.0
  %117 = vmatpush1.msra.mxu0 0.0
  %118 = vmatprep.subr.mxu0 0.0
  %119 = vmatpush1.msra.mxu0 0.0
  %120 = vmatprep.subr.mxu0 0.0
  %121 = vmatpush1.msra.mxu0 0.0
  %122 = vmatprep.mubr.f32.mxu0 0.0
  %123 = vmatmul.mubr.f32.gmra.mrb[0].mxu0 %v43
  %v124 = vpop.f32.mrb[0].mxu0
  %v125 = vadd.f32 %v39, %v124
  %v126 = vpop.f32.mrb[0].mxu0
  %v127 = vadd.f32 %v39, %v126
  %128 = vdwg.mxu0
  %129 = vmatprep.subr.mxu0 %v18
  %130 = vmatpush1.msra.mxu0 %v17
  %131 = vmatprep.subr.mxu0 %v22
  %132 = vmatpush1.msra.mxu0 %v21
  %133 = vmatprep.subr.mxu0 %v26
  %134 = vmatpush1.msra.mxu0 %v25
  %135 = vmatprep.subr.mxu0 %v30
  %136 = vmatpush1.msra.mxu0 %v29
  %137 = vmatprep.subr.mxu0 %v56
  %138 = vmatpush1.msra.mxu0 %v53
  %139 = vmatprep.subr.mxu0 0.0
  %140 = vmatpush1.msra.mxu0 0.0
  %141 = vmatprep.subr.mxu0 0.0
  %142 = vmatpush1.msra.mxu0 0.0
  %143 = vmatprep.subr.mxu0 0.0
  %144 = vmatpush1.msra.mxu0 0.0
  %145 = vmatprep.subr.mxu0 0.0
  %146 = vmatpush1.msra.mxu0 0.0
  %147 = vmatprep.subr.mxu0 0.0
  %148 = vmatpush1.msra.mxu0 0.0
  %149 = vmatprep.subr.mxu0 0.0
  %150 = vmatpush1.msra.mxu0 0.0
  %151 = vmatprep.subr.mxu0 0.0
  %152 = vmatpush1.msra.mxu0 0.0
  %153 = vmatprep.subr.mxu0 0.0
  %154 = vmatpush1.msra.mxu0 0.0
  %155 = vmatprep.subr.mxu0 0.0
  %156 = vmatpush1.msra.mxu0 0.0
  %157 = vmatprep.subr.mxu0 0.0
  %158 = vmatpush1.msra.mxu0 0.0
  %159 = vmatprep.subr.mxu0 0.0
  %160 = vmatpush1.msra.mxu0 0.0
  %161 = vmatprep.subr.mxu0 0.0
  %162 = vmatpush1.msra.mxu0 0.0
  %163 = vmatprep.subr.mxu0 0.0
  %164 = vmatpush1.msra.mxu0 0.0
  %165 = vmatprep.subr.mxu0 0.0
  %166 = vmatpush1.msra.mxu0 0.0
  %167 = vmatprep.subr.mxu0 0.0
  %168 = vmatpush1.msra.mxu0 0.0
  %169 = vmatprep.subr.mxu0 0.0
  %170 = vmatpush1.msra.mxu0 0.0
  %171 = vmatprep.subr.mxu0 0.0
  %172 = vmatpush1.msra.mxu0 0.0
  %173 = vmatprep.subr.mxu0 0.0
  %174 = vmatpush1.msra.mxu0 0.0
  %175 = vmatprep.subr.mxu0 0.0
  %176 = vmatpush1.msra.mxu0 0.0
  %177 = vmatprep.subr.mxu0 0.0
  %178 = vmatpush1.msra.mxu0 0.0
  %179 = vmatprep.subr.mxu0 0.0
  %180 = vmatpush1.msra.mxu0 0.0
  %181 = vmatprep.subr.mxu0 0.0
  %182 = vmatpush1.msra.mxu0 0.0
  %183 = vmatprep.subr.mxu0 0.0
  %184 = vmatpush1.msra.mxu0 0.0
  %185 = vmatprep.subr.mxu0 0.0
  %186 = vmatpush1.msra.mxu0 0.0
  %187 = vmatprep.subr.mxu0 0.0
  %188 = vmatpush1.msra.mxu0 0.0
  %189 = vmatprep.subr.mxu0 0.0
  %190 = vmatpush1.msra.mxu0 0.0
  %191 = vmatprep.subr.mxu0 0.0
  %192 = vmatpush1.msra.mxu0 0.0
  %193 = vmatprep.mubr.f32.mxu0 0.0
  %194 = vmatmul.mubr.f32.gmra.mrb[0].mxu0 %v43
  %v195 = vpop.f32.mrb[0].mxu0
  %v196 = vadd.f32 %v39, %v195
  %v197 = vpop.f32.mrb[0].mxu0
  %v198 = vadd.f32 %v39, %v197
  %199 = vdwg.mxu0
  %v200 = vand.u32 2147483647, %v125
  %vm201 = vcmp.le.f32.partialorder %v200, 0.7853982
  %vm202 = vcmp.lt.s32.totalorder %v125, 0
  %v203 = vand.u32 %v125, 2139095040
  %v204 = vshrl.u32 %v203, 23
  %v205 = vsub.s32 %v204, 127
  %v206 = vand.u32 2147483647, %v125
  %v207 = vand.u32 %v206, 8388607
  %v208 = vor.u32 %v207, 8388608
  %v209 = vsub.s32 0, %v208
  %v210 = vadd.s32 %v205, 1
  %vm211 = vcmp.gt.s32.totalorder %v210, 0
  %v212 = vsel %vm211, %v210, 0
  %v213 = vshrl.u32 %v212, 5
  %v214 = vand.u32 %v212, 31
  %v215 = vsub.s32 32, %v214
  %v216 = vshrl.u32 683565275, %v215
  %v217 = vshll.u32 683565275, %v214
  %v218 = vshrl.u32 2475754826, %v215
  %v219 = vor.u32 %v217, %v218
  %v220 = vshll.u32 2475754826, %v214
  %v221 = vshrl.u32 2131351028, %v215
  %v222 = vor.u32 %v220, %v221
  %v223 = vshll.u32 2131351028, %v214
  %v224 = vshrl.u32 2102212464, %v215
  %v225 = vor.u32 %v223, %v224
  %v226 = vshll.u32 2102212464, %v214
  %v227 = vshrl.u32 920167782, %v215
  %v228 = vor.u32 %v226, %v227
  %v229 = vshll.u32 920167782, %v214
  %v230 = vshrl.u32 1326507024, %v215
  %v231 = vor.u32 %v229, %v230
  %vm232 = vcmp.lt.s32.totalorder %v213, 1
  %vm233 = vcmp.lt.s32.totalorder %v213, 2
  %vm234 = vcmp.lt.s32.totalorder %v213, 3
  %vm235 = vcmp.lt.s32.totalorder %v213, 4
  %v236 = vsel %vm232, %v216, %v219
  %v237 = vsel %vm235, %v225, 2102212464
  %v238 = vsel %vm234, %v222, %v237
  %v239 = vsel %vm233, %v236, %v238
  %v240 = vsel %vm232, %v219, %v222
  %v241 = vsel %vm235, %v228, 920167782
  %v242 = vsel %vm234, %v225, %v241
  %v243 = vsel %vm233, %v240, %v242
  %v244 = vsel %vm232, %v222, %v225
  %v245 = vsel %vm235, %v231, 1326507024
  %v246 = vsel %vm234, %v228, %v245
  %v247 = vsel %vm233, %v244, %v246
  %v248 = vshll.u32 %v208, 8
  %v249 = vmul.u32.u64.compose %v248, %v247
  %v250 = vextract.low.u32 %v249
  %v251 = vextract.high.u32 %v249
  %v252 = vmul.u32.u64.compose %v248, %v243
  %v253 = vextract.low.u32 %v252
  %v254 = vextract.high.u32 %v252
  %v255 = vmul.u32 %v248, %v239
  %v256 = vadd.s32 %v251, %v253
  %vm257 = vc.u32 %v251, %v253
  %v258 = vadd.s32 %v254, 1
  %v259 = vsel %vm257, %v258, %v254
  %v260 = vadd.s32 %v255, %v259
  %v261 = vadd.s32 %v260, 536870912
  %v262 = vshrl.u32 %v261, 30
  %v263 = vshll.u32 %v262, 30
  %v264 = vsub.s32 %v260, %v263
  %vm265 = vcmp.lt.s32.totalorder %v264, 0
  %v266 = vsub.s32 0, %v264
  %v267 = vsel %vm265, %v266, %v264
  %v268 = vclz %v267
  %v269 = vsub.s32 %v268, 2
  %vm270 = vcmp.gt.s32.totalorder 0, %v269
  %v271 = vsel %vm270, 0, %v269
  %v272 = vsub.s32 32, %v271
  %v273 = vshll.u32 %v264, %v271
  %v274 = vshrl.u32 %v256, %v272
  %v275 = vor.u32 %v273, %v274
  %v276 = vsub.s32 4294967266, %v271
  %v277 = vadd.s32 %v276, 127
  %v278 = vshll.u32 %v277, 23
  %v279 = vor.u32 4788187, %v278
  %v280 = vand.u32 2147483647, %v279
  %v282 = vcvt.s32.f32 %v275
  %v283 = vmul.f32 %v282, %v280
  %v284 = vxor.u32 %v283, 2147483648
  %v285 = vsel %vm202, %v284, %v283
  %v286 = vsub.s32 4, %v262
  %v287 = vsel %vm202, %v286, %v262
  %v288 = vsel %vm201, %v125, %v285
  %v289 = vsel %vm201, 0, %v287
  %v290 = vcosq.f32.pop %v288
  %v291 = vsinq.f32.pop %v288
  %vm292 = vweird.f32 %v125
  %v293 = vand.u32 %v289, 3
  %vm294 = vcmp.lt.s32.totalorder %v293, 2
  %vm295 = vcmp.eq.s32.totalorder %v293, 0
  %v296 = vxor.u32 %v291, 2147483648
  %v297 = vsel %vm295, %v290, %v296
  %vm298 = vcmp.eq.s32.totalorder %v293, 2
  %v299 = vxor.u32 %v290, 2147483648
  %v300 = vsel %vm298, %v299, %v291
  %v301 = vsel %vm294, %v297, %v300
  %v302 = vsel %vm292, nan, %v301
  %v303 = vand.u32 2147483647, %v127
  %vm304 = vcmp.le.f32.partialorder %v303, 0.7853982
  %vm305 = vcmp.lt.s32.totalorder %v127, 0
  %v306 = vand.u32 %v127, 2139095040
  %v307 = vshrl.u32 %v306, 23
  %v308 = vsub.s32 %v307, 127
  %v309 = vand.u32 2147483647, %v127
  %v310 = vand.u32 %v309, 8388607
  %v311 = vor.u32 %v310, 8388608
  %v312 = vsub.s32 0, %v311
  %v313 = vadd.s32 %v308, 1
  %vm314 = vcmp.gt.s32.totalorder %v313, 0
  %v315 = vsel %vm314, %v313, 0
  %v316 = vshrl.u32 %v315, 5
  %v317 = vand.u32 %v315, 31
  %v318 = vsub.s32 32, %v317
  %v319 = vshrl.u32 683565275, %v318
  %v320 = vshll.u32 683565275, %v317
  %v321 = vshrl.u32 2475754826, %v318
  %v322 = vor.u32 %v320, %v321
  %v323 = vshll.u32 2475754826, %v317
  %v324 = vshrl.u32 2131351028, %v318
  %v325 = vor.u32 %v323, %v324
  %v326 = vshll.u32 2131351028, %v317
  %v327 = vshrl.u32 2102212464, %v318
  %v328 = vor.u32 %v326, %v327
  %v329 = vshll.u32 2102212464, %v317
  %v330 = vshrl.u32 920167782, %v318
  %v331 = vor.u32 %v329, %v330
  %v332 = vshll.u32 920167782, %v317
  %v333 = vshrl.u32 1326507024, %v318
  %v334 = vor.u32 %v332, %v333
  %vm335 = vcmp.lt.s32.totalorder %v316, 1
  %vm336 = vcmp.lt.s32.totalorder %v316, 2
  %vm337 = vcmp.lt.s32.totalorder %v316, 3
  %vm338 = vcmp.lt.s32.totalorder %v316, 4
  %v339 = vsel %vm335, %v319, %v322
  %v340 = vsel %vm338, %v328, 2102212464
  %v341 = vsel %vm337, %v325, %v340
  %v342 = vsel %vm336, %v339, %v341
  %v343 = vsel %vm335, %v322, %v325
  %v344 = vsel %vm338, %v331, 920167782
  %v345 = vsel %vm337, %v328, %v344
  %v346 = vsel %vm336, %v343, %v345
  %v347 = vsel %vm335, %v325, %v328
  %v348 = vsel %vm338, %v334, 1326507024
  %v349 = vsel %vm337, %v331, %v348
  %v350 = vsel %vm336, %v347, %v349
  %v351 = vshll.u32 %v311, 8
  %v352 = vmul.u32.u64.compose %v351, %v350
  %v353 = vextract.low.u32 %v352
  %v354 = vextract.high.u32 %v352
  %v355 = vmul.u32.u64.compose %v351, %v346
  %v356 = vextract.low.u32 %v355
  %v357 = vextract.high.u32 %v355
  %v358 = vmul.u32 %v351, %v342
  %v359 = vadd.s32 %v354, %v356
  %vm360 = vc.u32 %v354, %v356
  %v361 = vadd.s32 %v357, 1
  %v362 = vsel %vm360, %v361, %v357
  %v363 = vadd.s32 %v358, %v362
  %v364 = vadd.s32 %v363, 536870912
  %v365 = vshrl.u32 %v364, 30
  %v366 = vshll.u32 %v365, 30
  %v367 = vsub.s32 %v363, %v366
  %vm368 = vcmp.lt.s32.totalorder %v367, 0
  %v369 = vsub.s32 0, %v367
  %v370 = vsel %vm368, %v369, %v367
  %v371 = vclz %v370
  %v372 = vsub.s32 %v371, 2
  %vm373 = vcmp.gt.s32.totalorder 0, %v372
  %v374 = vsel %vm373, 0, %v372
  %v375 = vsub.s32 32, %v374
  %v376 = vshll.u32 %v367, %v374
  %v377 = vshrl.u32 %v359, %v375
  %v378 = vor.u32 %v376, %v377
  %v379 = vsub.s32 4294967266, %v374
  %v380 = vadd.s32 %v379, 127
  %v381 = vshll.u32 %v380, 23
  %v382 = vor.u32 4788187, %v381
  %v383 = vand.u32 2147483647, %v382
  %v385 = vcvt.s32.f32 %v378
  %v386 = vmul.f32 %v385, %v383
  %v387 = vxor.u32 %v386, 2147483648
  %v388 = vsel %vm305, %v387, %v386
  %v389 = vsub.s32 4, %v365
  %v390 = vsel %vm305, %v389, %v365
  %v391 = vsel %vm304, %v127, %v388
  %v392 = vsel %vm304, 0, %v390
  %v393 = vcosq.f32.pop %v391
  %v394 = vsinq.f32.pop %v391
  %vm395 = vweird.f32 %v127
  %v396 = vand.u32 %v392, 3
  %vm397 = vcmp.lt.s32.totalorder %v396, 2
  %vm398 = vcmp.eq.s32.totalorder %v396, 0
  %v399 = vxor.u32 %v394, 2147483648
  %v400 = vsel %vm398, %v393, %v399
  %vm401 = vcmp.eq.s32.totalorder %v396, 2
  %v402 = vxor.u32 %v393, 2147483648
  %v403 = vsel %vm401, %v402, %v394
  %v404 = vsel %vm397, %v400, %v403
  %v405 = vsel %vm395, nan, %v404
  %v406 = vand.u32 2147483647, %v196
  %vm407 = vcmp.le.f32.partialorder %v406, 0.7853982
  %vm408 = vcmp.lt.s32.totalorder %v196, 0
  %v409 = vand.u32 %v196, 2139095040
  %v410 = vshrl.u32 %v409, 23
  %v411 = vsub.s32 %v410, 127
  %v412 = vand.u32 2147483647, %v196
  %v413 = vand.u32 %v412, 8388607
  %v414 = vor.u32 %v413, 8388608
  %v415 = vsub.s32 0, %v414
  %v416 = vadd.s32 %v411, 1
  %vm417 = vcmp.gt.s32.totalorder %v416, 0
  %v418 = vsel %vm417, %v416, 0
  %v419 = vshrl.u32 %v418, 5
  %v420 = vand.u32 %v418, 31
  %v421 = vsub.s32 32, %v420
  %v422 = vshrl.u32 683565275, %v421
  %v423 = vshll.u32 683565275, %v420
  %v424 = vshrl.u32 2475754826, %v421
  %v425 = vor.u32 %v423, %v424
  %v426 = vshll.u32 2475754826, %v420
  %v427 = vshrl.u32 2131351028, %v421
  %v428 = vor.u32 %v426, %v427
  %v429 = vshll.u32 2131351028, %v420
  %v430 = vshrl.u32 2102212464, %v421
  %v431 = vor.u32 %v429, %v430
  %v432 = vshll.u32 2102212464, %v420
  %v433 = vshrl.u32 920167782, %v421
  %v434 = vor.u32 %v432, %v433
  %v435 = vshll.u32 920167782, %v420
  %v436 = vshrl.u32 1326507024, %v421
  %v437 = vor.u32 %v435, %v436
  %vm438 = vcmp.lt.s32.totalorder %v419, 1
  %vm439 = vcmp.lt.s32.totalorder %v419, 2
  %vm440 = vcmp.lt.s32.totalorder %v419, 3
  %vm441 = vcmp.lt.s32.totalorder %v419, 4
  %v442 = vsel %vm438, %v422, %v425
  %v443 = vsel %vm441, %v431, 2102212464
  %v444 = vsel %vm440, %v428, %v443
  %v445 = vsel %vm439, %v442, %v444
  %v446 = vsel %vm438, %v425, %v428
  %v447 = vsel %vm441, %v434, 920167782
  %v448 = vsel %vm440, %v431, %v447
  %v449 = vsel %vm439, %v446, %v448
  %v450 = vsel %vm438, %v428, %v431
  %v451 = vsel %vm441, %v437, 1326507024
  %v452 = vsel %vm440, %v434, %v451
  %v453 = vsel %vm439, %v450, %v452
  %v454 = vshll.u32 %v414, 8
  %v455 = vmul.u32.u64.compose %v454, %v453
  %v456 = vextract.low.u32 %v455
  %v457 = vextract.high.u32 %v455
  %v458 = vmul.u32.u64.compose %v454, %v449
  %v459 = vextract.low.u32 %v458
  %v460 = vextract.high.u32 %v458
  %v461 = vmul.u32 %v454, %v445
  %v462 = vadd.s32 %v457, %v459
  %vm463 = vc.u32 %v457, %v459
  %v464 = vadd.s32 %v460, 1
  %v465 = vsel %vm463, %v464, %v460
  %v466 = vadd.s32 %v461, %v465
  %v467 = vadd.s32 %v466, 536870912
  %v468 = vshrl.u32 %v467, 30
  %v469 = vshll.u32 %v468, 30
  %v470 = vsub.s32 %v466, %v469
  %vm471 = vcmp.lt.s32.totalorder %v470, 0
  %v472 = vsub.s32 0, %v470
  %v473 = vsel %vm471, %v472, %v470
  %v474 = vclz %v473
  %v475 = vsub.s32 %v474, 2
  %vm476 = vcmp.gt.s32.totalorder 0, %v475
  %v477 = vsel %vm476, 0, %v475
  %v478 = vsub.s32 32, %v477
  %v479 = vshll.u32 %v470, %v477
  %v480 = vshrl.u32 %v462, %v478
  %v481 = vor.u32 %v479, %v480
  %v482 = vsub.s32 4294967266, %v477
  %v483 = vadd.s32 %v482, 127
  %v484 = vshll.u32 %v483, 23
  %v485 = vor.u32 4788187, %v484
  %v486 = vand.u32 2147483647, %v485
  %v488 = vcvt.s32.f32 %v481
  %v489 = vmul.f32 %v488, %v486
  %v490 = vxor.u32 %v489, 2147483648
  %v491 = vsel %vm408, %v490, %v489
  %v492 = vsub.s32 4, %v468
  %v493 = vsel %vm408, %v492, %v468
  %v494 = vsel %vm407, %v196, %v491
  %v495 = vsel %vm407, 0, %v493
  %v496 = vcosq.f32.pop %v494
  %v497 = vsinq.f32.pop %v494
  %vm498 = vweird.f32 %v196
  %v499 = vand.u32 %v495, 3
  %vm500 = vcmp.lt.s32.totalorder %v499, 2
  %vm501 = vcmp.eq.s32.totalorder %v499, 0
  %v502 = vxor.u32 %v497, 2147483648
  %v503 = vsel %vm501, %v496, %v502
  %vm504 = vcmp.eq.s32.totalorder %v499, 2
  %v505 = vxor.u32 %v496, 2147483648
  %v506 = vsel %vm504, %v505, %v497
  %v507 = vsel %vm500, %v503, %v506
  %v508 = vsel %vm498, nan, %v507
  %v509 = vand.u32 2147483647, %v198
  %vm510 = vcmp.le.f32.partialorder %v509, 0.7853982
  %vm511 = vcmp.lt.s32.totalorder %v198, 0
  %v512 = vand.u32 %v198, 2139095040
  %v513 = vshrl.u32 %v512, 23
  %v514 = vsub.s32 %v513, 127
  %v515 = vand.u32 2147483647, %v198
  %v516 = vand.u32 %v515, 8388607
  %v517 = vor.u32 %v516, 8388608
  %v518 = vsub.s32 0, %v517
  %v519 = vadd.s32 %v514, 1
  %vm520 = vcmp.gt.s32.totalorder %v519, 0
  %v521 = vsel %vm520, %v519, 0
  %v522 = vshrl.u32 %v521, 5
  %v523 = vand.u32 %v521, 31
  %v524 = vsub.s32 32, %v523
  %v525 = vshrl.u32 683565275, %v524
  %v526 = vshll.u32 683565275, %v523
  %v527 = vshrl.u32 2475754826, %v524
  %v528 = vor.u32 %v526, %v527
  %v529 = vshll.u32 2475754826, %v523
  %v530 = vshrl.u32 2131351028, %v524
  %v531 = vor.u32 %v529, %v530
  %v532 = vshll.u32 2131351028, %v523
  %v533 = vshrl.u32 2102212464, %v524
  %v534 = vor.u32 %v532, %v533
  %v535 = vshll.u32 2102212464, %v523
  %v536 = vshrl.u32 920167782, %v524
  %v537 = vor.u32 %v535, %v536
  %v538 = vshll.u32 920167782, %v523
  %v539 = vshrl.u32 1326507024, %v524
  %v540 = vor.u32 %v538, %v539
  %vm541 = vcmp.lt.s32.totalorder %v522, 1
  %vm542 = vcmp.lt.s32.totalorder %v522, 2
  %vm543 = vcmp.lt.s32.totalorder %v522, 3
  %vm544 = vcmp.lt.s32.totalorder %v522, 4
  %v545 = vsel %vm541, %v525, %v528
  %v546 = vsel %vm544, %v534, 2102212464
  %v547 = vsel %vm543, %v531, %v546
  %v548 = vsel %vm542, %v545, %v547
  %v549 = vsel %vm541, %v528, %v531
  %v550 = vsel %vm544, %v537, 920167782
  %v551 = vsel %vm543, %v534, %v550
  %v552 = vsel %vm542, %v549, %v551
  %v553 = vsel %vm541, %v531, %v534
  %v554 = vsel %vm544, %v540, 1326507024
  %v555 = vsel %vm543, %v537, %v554
  %v556 = vsel %vm542, %v553, %v555
  %v557 = vshll.u32 %v517, 8
  %v558 = vmul.u32.u64.compose %v557, %v556
  %v559 = vextract.low.u32 %v558
  %v560 = vextract.high.u32 %v558
  %v561 = vmul.u32.u64.compose %v557, %v552
  %v562 = vextract.low.u32 %v561
  %v563 = vextract.high.u32 %v561
  %v564 = vmul.u32 %v557, %v548
  %v565 = vadd.s32 %v560, %v562
  %vm566 = vc.u32 %v560, %v562
  %v567 = vadd.s32 %v563, 1
  %v568 = vsel %vm566, %v567, %v563
  %v569 = vadd.s32 %v564, %v568
  %v570 = vadd.s32 %v569, 536870912
  %v571 = vshrl.u32 %v570, 30
  %v572 = vshll.u32 %v571, 30
  %v573 = vsub.s32 %v569, %v572
  %vm574 = vcmp.lt.s32.totalorder %v573, 0
  %v575 = vsub.s32 0, %v573
  %v576 = vsel %vm574, %v575, %v573
  %v577 = vclz %v576
  %v578 = vsub.s32 %v577, 2
  %vm579 = vcmp.gt.s32.totalorder 0, %v578
  %v580 = vsel %vm579, 0, %v578
  %v581 = vsub.s32 32, %v580
  %v582 = vshll.u32 %v573, %v580
  %v583 = vshrl.u32 %v565, %v581
  %v584 = vor.u32 %v582, %v583
  %v585 = vsub.s32 4294967266, %v580
  %v586 = vadd.s32 %v585, 127
  %v587 = vshll.u32 %v586, 23
  %v588 = vor.u32 4788187, %v587
  %v589 = vand.u32 2147483647, %v588
  %v591 = vcvt.s32.f32 %v584
  %v592 = vmul.f32 %v591, %v589
  %v593 = vxor.u32 %v592, 2147483648
  %v594 = vsel %vm511, %v593, %v592
  %v595 = vsub.s32 4, %v571
  %v596 = vsel %vm511, %v595, %v571
  %v597 = vsel %vm510, %v198, %v594
  %v598 = vsel %vm510, 0, %v596
  %v599 = vcosq.f32.pop %v597
  %v600 = vsinq.f32.pop %v597
  %vm601 = vweird.f32 %v198
  %v602 = vand.u32 %v598, 3
  %vm603 = vcmp.lt.s32.totalorder %v602, 2
  %vm604 = vcmp.eq.s32.totalorder %v602, 0
  %v605 = vxor.u32 %v600, 2147483648
  %v606 = vsel %vm604, %v599, %v605
  %vm607 = vcmp.eq.s32.totalorder %v602, 2
  %v608 = vxor.u32 %v599, 2147483648
  %v609 = vsel %vm607, %v608, %v600
  %v610 = vsel %vm603, %v606, %v609
  %v611 = vsel %vm601, nan, %v610
  %612 = vst [vmem:[%s3] sm:$0xff] %v302
  %613 = vst [vmem:[%s3 + $0x8] sm:$0xff] %v405
  %614 = vst [vmem:[%s3 + $0x10] sm:$0xff] %v508
  %615 = vst [vmem:[%s3 + $0x18] sm:$0xff] %v611
  // Predicated region
  $region14: #{random_cos.1} parent=0 // pred_check
    _
  $region15: #{random_cos.1} parent=0 // pred_check_branch
    %617 = sbr.rel (0) target = $region17
  $region16: #{random_cos.1} parent=0 // pred_region
    _
  $region17: #{random_cos.1} parent=0 // pred_fallthru
    _
  // Predicated region
  $region18: #{random_cos.1} parent=0 // pred_check
    _
  $region19: #{random_cos.1} parent=0 // pred_check_branch
    %619 = sbr.rel (0) target = $region21
  $region20: #{random_cos.1} parent=0 // pred_region
    _
  $region21: #{random_cos.1} parent=0 // pred_fallthru
    _

</llo_original>
